<compile_context>
chip_gen: v7x
topology: tpu7x:2x2x1
jax: 0.10.0
libtpu: 0.0.40
codegen_flags: <defaults>
</compile_context>

<pallas_src>
import functools

import jax
import jax.numpy as jnp
from jax.experimental import pallas as pl
from jax.experimental.pallas import tpu as pltpu


def _round_up(x, m):
    return ((x + m - 1) // m) * m


def _make_rmse_kernel(inv_d):
    """inv_d = 1.0 / (C*H*W) baked in as a compile-time constant."""

    def _rmse_kernel(pred_ref, gt_ref, out_ref, rowsum_ref):
        k = pl.program_id(1)  # d-tile (reduction) axis, innermost

        @pl.when(k == 0)
        def _():
            rowsum_ref[...] = jnp.zeros_like(rowsum_ref)

        p = pred_ref[...]
        g = gt_ref[...]
        # Skip casts when already f32; cast otherwise (v5e has no bf16 VALU).
        if p.dtype != jnp.float32:
            p = p.astype(jnp.float32)
        if g.dtype != jnp.float32:
            g = g.astype(jnp.float32)

        diff = p - g
        rowsum_ref[...] += jnp.sum(diff * diff, axis=-1, keepdims=True)

        @pl.when(k == pl.num_programs(1) - 1)
        def _():
            # sqrt only after the full d reduction; then reduce this batch
            # block to a single partial sum.
            per_sample = jnp.sqrt(rowsum_ref[...] * inv_d)          # (TB, 1)
            out_ref[...] = jnp.sum(per_sample, axis=0, keepdims=True)  # (1, 1)

    return _rmse_kernel


@functools.partial(jax.jit, static_argnames=("mode",))
def rmse_loss(pred, gt, mode="sum"):
    assert pred.shape == gt.shape and pred.ndim == 4
    n, c, h, w = pred.shape
    d = c * h * w

    pred2 = pred.reshape(n, d)
    gt2 = gt.reshape(n, d)

    # ---- tile selection -------------------------------------------------
    # Batch tile: multiple of 8 sublanes, up to 128 rows per step.
    tb = min(128, _round_up(n, 8))
    n_pad = _round_up(n, tb)

    # d tile: multiple of 128 lanes, sized so each input block is ~<=4 MiB f32
    # (well inside the v7x 64 MiB VMEM budget with 2 inputs x 2 pipeline bufs).
    target_block_elems = (4 * 1024 * 1024) // 4       # 1M f32 elems per block
    d_pad128 = _round_up(d, 128)
    td = min(d_pad128, max(128, (target_block_elems // tb) // 128 * 128))
    d_pad = _round_up(d, td)

    # ---- zero-pad to tile multiples (padding contributes exactly 0) -----
    if n_pad != n or d_pad != d:
        pred2 = jnp.pad(pred2, ((0, n_pad - n), (0, d_pad - d)))
        gt2 = jnp.pad(gt2, ((0, n_pad - n), (0, d_pad - d)))

    n_blocks = n_pad // tb
    d_blocks = d_pad // td

    kernel = _make_rmse_kernel(1.0 / float(d))

    partials = pl.pallas_call(
        kernel,
        out_shape=jax.ShapeDtypeStruct((n_blocks, 1), jnp.float32),
        grid_spec=pltpu.PrefetchScalarGridSpec(
            num_scalar_prefetch=0,
            grid=(n_blocks, d_blocks),
            in_specs=[
                pl.BlockSpec((tb, td), lambda i, k: (i, k)),
                pl.BlockSpec((tb, td), lambda i, k: (i, k)),
            ],
            out_specs=pl.BlockSpec((1, 1), lambda i, k: (i, 0)),
            scratch_shapes=[pltpu.VMEM((tb, 1), jnp.float32)],
        ),
        compiler_params=pltpu.CompilerParams(
            # batch blocks independent -> megacore-parallel on v7x;
            # d is the reduction axis (accumulator scratch) -> arbitrary.
            dimension_semantics=("parallel", "arbitrary"),
            vmem_limit_bytes=48 * 1024 * 1024,
        ),
    )(pred2, gt2)

    total = jnp.sum(partials)  # padded rows contribute sqrt(0) = 0
    if mode == "sum":
        return total
    return total / n  # mode='mean' -> mean over batch of per-sample RMSE


def _reference(pred, gt, mode="sum"):
    r = (pred - gt) ** 2
    per = jnp.sqrt(jnp.mean(r, axis=(1, 2, 3)))
    return jnp.sum(per) if mode == "sum" else jnp.mean(per)


if __name__ == "__main__":
    key = jax.random.PRNGKey(0)
    k1, k2, k3, k4 = jax.random.split(key, 4)

    # Shape from the original spec's usage: NCHW, small.
    pred = jax.random.normal(k1, (2, 4, 16, 16), dtype=jnp.float32)
    gt = jax.random.normal(k2, (2, 4, 16, 16), dtype=jnp.float32)

    out_sum = jax.block_until_ready(rmse_loss(pred, gt, mode="sum"))
    out_mean = jax.block_until_ready(rmse_loss(pred, gt, mode="mean"))

    assert jnp.allclose(out_sum, _reference(pred, gt, "sum"), rtol=1e-5, atol=1e-5)
    assert jnp.allclose(out_mean, _reference(pred, gt, "mean"), rtol=1e-5, atol=1e-5)

    # Ragged shape (n not multiple of 8, d not multiple of 128) -> exercises
    # the zero-padding path.
    pred_r = jax.random.normal(k3, (3, 3, 17, 17), dtype=jnp.float32)
    gt_r = jax.random.normal(k4, (3, 3, 17, 17), dtype=jnp.float32)
    out_r = jax.block_until_ready(rmse_loss(pred_r, gt_r, mode="sum"))
    assert jnp.allclose(out_r, _reference(pred_r, gt_r, "sum"), rtol=1e-5, atol=1e-5)

    print("KERNEL_OK")
</pallas_src>

<mosaic_0001>
module attributes {stable_mosaic.version = 11 : i64} {
  func.func @_rmse_kernel(%arg0: i32, %arg1: i32, %arg2: memref<8x1024xf32, #tpu.memory_space<vmem>>, %arg3: memref<8x1024xf32, #tpu.memory_space<vmem>>, %arg4: memref<1x1xf32, #tpu.memory_space<vmem>>, %arg5: memref<8x1xf32, #tpu.memory_space<vmem>>) attributes {dimension_semantics = [#tpu.dimension_semantics<parallel>, #tpu.dimension_semantics<arbitrary>], iteration_bounds = array<i64: 1, 1>, scalar_prefetch = 0 : i64, scratch_operands = 1 : i64, tpu.core_type = #tpu.core_type<tc>, window_params = [{transform_indices = @transform_0, window_bounds = array<i64: 8, 1024>}, {transform_indices = @transform_1, window_bounds = array<i64: 8, 1024>}, {transform_indices = @transform_2, window_bounds = array<i64: 1, 1>}]} {
    %c0_i32 = arith.constant 0 : i32
    %0 = arith.cmpi eq, %arg1, %c0_i32 : i32
    %1 = arith.extui %0 : i1 to i32
    %c0_i32_0 = arith.constant 0 : i32
    %2 = arith.cmpi ne, %1, %c0_i32_0 : i32
    scf.if %2 {
      %cst_10 = arith.constant 0.000000e+00 : f32
      %15 = vector.broadcast %cst_10 : f32 to vector<8x1xf32>
      %c0_11 = arith.constant 0 : index
      %c0_12 = arith.constant 0 : index
      %16 = vector.load %arg5[%c0_11, %c0_12] : memref<8x1xf32, #tpu.memory_space<vmem>>, vector<8x1xf32>
      tpu.vector_store %arg5[%c0_11, %c0_12], %15 {strides = array<i32>} : memref<8x1xf32, #tpu.memory_space<vmem>>, vector<8x1xf32>,
    } else {
    }
    %c0 = arith.constant 0 : index
    %c0_1 = arith.constant 0 : index
    %3 = vector.load %arg2[%c0, %c0_1] : memref<8x1024xf32, #tpu.memory_space<vmem>>, vector<8x1024xf32>
    %c0_2 = arith.constant 0 : index
    %c0_3 = arith.constant 0 : index
    %4 = vector.load %arg3[%c0_2, %c0_3] : memref<8x1024xf32, #tpu.memory_space<vmem>>, vector<8x1024xf32>
    %5 = arith.subf %3, %4 : vector<8x1024xf32>
    %c0_4 = arith.constant 0 : index
    %c0_5 = arith.constant 0 : index
    %6 = vector.load %arg5[%c0_4, %c0_5] : memref<8x1xf32, #tpu.memory_space<vmem>>, vector<8x1xf32>
    %7 = arith.mulf %5, %5 : vector<8x1024xf32>
    %cst = arith.constant dense<0.000000e+00> : vector<8xf32>
    %8 = vector.multi_reduction <add>, %7, %cst [1] : vector<8x1024xf32> to vector<8xf32>
    %9 = vector.shape_cast %8 : vector<8xf32> to vector<8x1xf32>
    %10 = arith.addf %6, %9 : vector<8x1xf32>
    %c0_6 = arith.constant 0 : index
    %c0_7 = arith.constant 0 : index
    %11 = vector.load %arg5[%c0_6, %c0_7] : memref<8x1xf32, #tpu.memory_space<vmem>>, vector<8x1xf32>
    tpu.vector_store %arg5[%c0_6, %c0_7], %10 {strides = array<i32>} : memref<8x1xf32, #tpu.memory_space<vmem>>, vector<8x1xf32>,
    %c0_i32_8 = arith.constant 0 : i32
    %12 = arith.cmpi eq, %arg1, %c0_i32_8 : i32
    %13 = arith.extui %12 : i1 to i32
    %c0_i32_9 = arith.constant 0 : i32
    %14 = arith.cmpi ne, %13, %c0_i32_9 : i32
    scf.if %14 {
      %c0_10 = arith.constant 0 : index
      %c0_11 = arith.constant 0 : index
      %15 = vector.load %arg5[%c0_10, %c0_11] : memref<8x1xf32, #tpu.memory_space<vmem>>, vector<8x1xf32>
      %cst_12 = arith.constant 9.765625E-4 : f32
      %16 = vector.broadcast %cst_12 : f32 to vector<8x1xf32>
      %17 = arith.mulf %15, %16 : vector<8x1xf32>
      %18 = math.sqrt %17 : vector<8x1xf32>
      %cst_13 = arith.constant dense<0.000000e+00> : vector<1xf32>
      %19 = vector.multi_reduction <add>, %18, %cst_13 [0] : vector<8x1xf32> to vector<1xf32>
      %20 = vector.shape_cast %19 : vector<1xf32> to vector<1x1xf32>
      %c0_14 = arith.constant 0 : index
      %c0_15 = arith.constant 0 : index
      %21 = vector.load %arg4[%c0_14, %c0_15] : memref<1x1xf32, #tpu.memory_space<vmem>>, vector<1x1xf32>
      tpu.vector_store %arg4[%c0_14, %c0_15], %20 {strides = array<i32>} : memref<1x1xf32, #tpu.memory_space<vmem>>, vector<1x1xf32>,
    } else {
    }
    return
  }
  func.func @transform_0(%arg0: i32, %arg1: i32) -> (i32, i32) {
    %c0_i32 = arith.constant 0 : i32
    return %arg0, %arg1 : i32, i32
  }
  func.func @transform_1(%arg0: i32, %arg1: i32) -> (i32, i32) {
    %c0_i32 = arith.constant 0 : i32
    return %arg0, %arg1 : i32, i32
  }
  func.func @transform_2(%arg0: i32, %arg1: i32) -> (i32, i32) {
    %c0_i32 = arith.constant 0 : i32
    %c0_i32_0 = arith.constant 0 : i32
    return %arg0, %c0_i32 : i32, i32
  }
}

</mosaic_0001>

<llo_original>
// kernel: rmse_loss.1
$region0: #{rmse_loss.1}
  #allocation0 [shape = 'u32[]', space=smem, size = 0x4, offset = 0x4, fixed_abs, tag = 'smem constant byte address 0x4 - core index']
  #allocation1 [shape = 'u32[144,128]{1,0:T(1,128)}', space=vmem, size = 0x12000, scoped, tag = 'internal scratch']
  #allocation2 [shape = 'f32[8,1]{1,0:T(8,128)}', space=vmem, size = 0x1000, scoped, tag = 'scratch operand']
  %s0 = inlined_call_operand.vmem [shape: f32[8,1024], index: 0, kind: input, shape index: {}]
  %s1 = inlined_call_operand.vmem [shape: f32[8,1024], index: 1, kind: input, shape index: {}]
  %s2 = inlined_call_operand.hbm [shape: f32[1,1], index: 2, kind: output, shape index: {}]
  %s3 = sld [smem:[#allocation0]]
  $region26: #{rmse_loss.1} parent=0
    _
  %s5 = ssub.s32 1, %s3
  %s6 = scalar_select 0, %s5, %s3
  $region1: #{rmse_loss.1} parent=0
    #allocation3 [shape = 'u8[512]{0}', space=vmem, size = 0x400, scoped, tag = 'output window, operand 0, single buffered']
    #allocation4 [shape = 's32[1]{0}', space=sflag, size = 0x4, scoped, tag = 'scoped memory for rmse_loss.1']
    %7 = vsyncpa [#allocation4], 0
    // Predicated region
    $region2: #{rmse_loss.1} parent=1 // pred_check
      _
    $region3: #{rmse_loss.1} parent=1 // pred_check_branch
      %9 = sbr.rel (0) target = $region5
    $region4: #{rmse_loss.1} parent=1 // pred_region
      _
    $region5: #{rmse_loss.1} parent=1 // pred_fallthru
      _
    // Predicated region
    $region6: #{rmse_loss.1} parent=1 // pred_check
      _
    $region7: #{rmse_loss.1} parent=1 // pred_check_branch
      %11 = sbr.rel (0) target = $region9
    $region8: #{rmse_loss.1} parent=1 // pred_region
      _
    $region9: #{rmse_loss.1} parent=1 // pred_fallthru
      _
    %p12 = scmp.eq.s32.totalorder 0, 0
    // Predicated region
    $region10: #{rmse_loss.1} parent=1 // pred_check
      %p13 = pneg %p12
    $region11: #{rmse_loss.1} parent=1 // pred_check_branch
      %15 = sbr.rel (%p13) target = $region13
    $region12: #{rmse_loss.1} parent=1 // pred_region
      %vm16 = vcmask 7168
      %17 = vst.msk [vmem:[#allocation2] sm:$0xff] %vm16, 0.0
    $region13: #{rmse_loss.1} parent=1 // pred_fallthru
      _
    %v18 = vld [vmem:[%s0] sm:$0xff]
    %v19 = vld [vmem:[%s0 + $0x8] sm:$0xff]
    %v20 = vld [vmem:[%s0 + $0x10] sm:$0xff]
    %v21 = vld [vmem:[%s0 + $0x18] sm:$0xff]
    %v22 = vld [vmem:[%s0 + $0x20] sm:$0xff]
    %v23 = vld [vmem:[%s0 + $0x28] sm:$0xff]
    %v24 = vld [vmem:[%s0 + $0x30] sm:$0xff]
    %v25 = vld [vmem:[%s0 + $0x38] sm:$0xff]
    %v26 = vld [vmem:[%s1] sm:$0xff]
    %v27 = vld [vmem:[%s1 + $0x8] sm:$0xff]
    %v28 = vld [vmem:[%s1 + $0x10] sm:$0xff]
    %v29 = vld [vmem:[%s1 + $0x18] sm:$0xff]
    %v30 = vld [vmem:[%s1 + $0x20] sm:$0xff]
    %v31 = vld [vmem:[%s1 + $0x28] sm:$0xff]
    %v32 = vld [vmem:[%s1 + $0x30] sm:$0xff]
    %v33 = vld [vmem:[%s1 + $0x38] sm:$0xff]
    %v34 = vsub.f32 %v18, %v26
    %v35 = vsub.f32 %v19, %v27
    %v36 = vsub.f32 %v20, %v28
    %v37 = vsub.f32 %v21, %v29
    %v38 = vsub.f32 %v22, %v30
    %v39 = vsub.f32 %v23, %v31
    %v40 = vsub.f32 %v24, %v32
    %v41 = vsub.f32 %v25, %v33
    %v42 = vld [vmem:[#allocation2] sm:$0xff]
    %v43 = vmul.f32 %v34, %v34
    %v44 = vmul.f32 %v35, %v35
    %v45 = vmul.f32 %v36, %v36
    %v46 = vmul.f32 %v37, %v37
    %v47 = vmul.f32 %v38, %v38
    %v48 = vmul.f32 %v39, %v39
    %v49 = vmul.f32 %v40, %v40
    %v50 = vmul.f32 %v41, %v41
    %v51 = vadd.f32 %v43, %v44
    %v52 = vadd.f32 %v51, %v45
    %v53 = vadd.f32 %v52, %v46
    %v54 = vadd.f32 %v53, %v47
    %v55 = vadd.f32 %v54, %v48
    %v56 = vadd.f32 %v55, %v49
    %v57 = vadd.f32 %v56, %v50
    %58 = vadd.xlane.f32.xlu0 %v57
    %v59 = vpop.xlane.xlu0 %58
    %v60 = vadd.f32 %v42, %v59
    %vm61 = vcmask 7168
    %62 = vst.msk [vmem:[#allocation2] sm:$0xff] %vm61, %v60
    // Predicated region
    $region14: #{rmse_loss.1} parent=1 // pred_check
      %p63 = pneg %p12
    $region15: #{rmse_loss.1} parent=1 // pred_check_branch
      %65 = sbr.rel (%p63) target = $region17
    $region16: #{rmse_loss.1} parent=1 // pred_region
      %v66 = vld [vmem:[#allocation2] sm:$0xff]
      %v67 = vmul.f32 %v66, 0.0009765625
      %v68 = vrsqrt.pop %v67
      %v69 = vmul.f32 %v67, %v68
      %vm70 = vcmp.eq.f32.partialorder %v67, inf
      %v71 = vsel %vm70, %v67, %v69
      %vm72 = vcmp.eq.f32.partialorder %v67, 0.0
      %v73 = vand.u32 %v67, 2147483648
      %v74 = vsel %vm72, %v73, %v71
      %v75 = vsel %vm61, %v74, 0.0
      %v76 = vrot.slane %v75, 4
      %v77 = vadd.f32 %v75, %v76
      %v78 = vrot.slane %v77, 2
      %v79 = vadd.f32 %v77, %v78
      %v80 = vrot.slane %v79, 1
      %v81 = vadd.f32 %v79, %v80
      %vm82 = vcmask 0
      %83 = vst.msk [vmem:[#allocation3] sm:$0x1] %vm82, %v81
    $region17: #{rmse_loss.1} parent=1 // pred_fallthru
      _
    // Predicated region
    $region18: #{rmse_loss.1} parent=1 // pred_check
      _
    $region19: #{rmse_loss.1} parent=1 // pred_check_branch
      %85 = sbr.rel (0) target = $region21
    $region20: #{rmse_loss.1} parent=1 // pred_region
      %s87 = ssub.s32 16, 16
      %88 = vsyncadd [#allocation4], %s87
      %s90 = sshll.u32 [#allocation3], 4
      %s91 = int_to_ptr.vmem [resolvable:$true] %s90
      %93 = dma.vmem_to_hbm [thread:$0]  %s91, 16, %s2, [#allocation4]
    $region21: #{rmse_loss.1} parent=1 // pred_fallthru
      _
    // Predicated region
    $region22: #{rmse_loss.1} parent=1 // pred_check
      _
    $region23: #{rmse_loss.1} parent=1 // pred_check_branch
      %95 = sbr.rel (0) target = $region25
    $region24: #{rmse_loss.1} parent=1 // pred_region
      %96 = dma.done [#allocation4], 16
    $region25: #{rmse_loss.1} parent=1 // pred_fallthru
      _
    %97 = vsyncpa [#allocation4], 1

</llo_original>
